<compile_context>
chip_gen: v7x
topology: tpu7x:2x2x1
jax: 0.10.0
libtpu: 0.0.40
codegen_flags: <defaults>
</compile_context>

<pallas_src>
import numpy as np
import jax
import jax.numpy as jnp
from jax.experimental import pallas as pl
from jax.experimental.pallas import tpu as pltpu  # noqa: F401  (TPU backend)

SUBLANE = 8    # f32 sublane granularity
LANE = 128     # lane granularity


def _round_up(x, m):
    return (x + m - 1) // m * m


# ------------------------------ Pallas kernel -------------------------------
def linear_kernel(x_ref, w_ref, b_ref, o_ref):
    # x_ref: (C_in_pad,  N_pad)   columns = flattened (B, H, W) positions
    # w_ref: (C_out_pad, C_in_pad)
    # b_ref: (C_out_pad, 1)       bias column (lane-broadcast in the add)
    # o_ref: (C_out_pad, N_pad)
    o_ref[...] = (
        jnp.dot(w_ref[...], x_ref[...], preferred_element_type=jnp.float32)
        + b_ref[...]
    )


# ------------------------------ jitted wrapper -------------------------------
@jax.jit
def linear_forward(x, weight, bias):
    """1x1 Conv2d forward.

    x:      (B, C_in, H, W) float32
    weight: (C_out, C_in, 1, 1) float32   (PyTorch Conv2d layout)
    bias:   (C_out,) float32
    returns (B, C_out, H, W) float32
    """
    B, C_in, H, W = x.shape
    C_out = weight.shape[0]
    N = B * H * W

    c_in_pad = _round_up(C_in, SUBLANE)       # 4  -> 8
    c_out_pad = _round_up(C_out, SUBLANE)     # 8  -> 8
    n_pad = _round_up(N, LANE)                # 512 -> 512 (lane-dense)

    # ---- layout plumbing: channels on sublanes, spatial on lanes ------------
    x_cols = jnp.transpose(x, (1, 0, 2, 3)).reshape(C_in, N)        # (C_in, N)
    x_pad = jnp.pad(x_cols, ((0, c_in_pad - C_in), (0, n_pad - N)))

    w2d = weight[:, :, 0, 0]                                         # (C_out, C_in)
    w_pad = jnp.pad(w2d, ((0, c_out_pad - C_out), (0, c_in_pad - C_in)))

    b_pad = jnp.pad(bias, (0, c_out_pad - C_out)).reshape(c_out_pad, 1)

    out_pad = pl.pallas_call(
        linear_kernel,
        out_shape=jax.ShapeDtypeStruct((c_out_pad, n_pad), jnp.float32),
        cost_estimate=pl.CostEstimate(
            flops=2 * C_out * C_in * N,
            transcendentals=0,
            bytes_accessed=4 * (C_in * N + C_out * C_in + C_out + C_out * N),
        ),
    )(x_pad, w_pad, b_pad)

    # ---- strip padding, restore (B, C_out, H, W) -----------------------------
    out = out_pad[:C_out, :N].reshape(C_out, B, H, W)
    return jnp.transpose(out, (1, 0, 2, 3))


# ------------------------- pure-JAX reference check -------------------------
def ref_forward(x, weight, bias):
    w2d = weight[:, :, 0, 0]                                # (C_out, C_in)
    y = jnp.einsum("bchw,oc->bohw", x, w2d)
    return y + bias[None, :, None, None]


# ----------------------------------- main ------------------------------------
if __name__ == "__main__":
    B, C_IN, C_OUT, H, W = 2, 4, 8, 16, 16

    key = jax.random.PRNGKey(0)
    k_x, k_w, k_b = jax.random.split(key, 3)

    x = jax.random.normal(k_x, (B, C_IN, H, W), jnp.float32)
    weight = 0.1 * jax.random.normal(k_w, (C_OUT, C_IN, 1, 1), jnp.float32)
    bias = 0.1 * jax.random.normal(k_b, (C_OUT,), jnp.float32)

    out = linear_forward(x, weight, bias)
    jax.block_until_ready(out)

    out_ref = ref_forward(x, weight, bias)
    assert out.shape == (B, C_OUT, H, W)
    assert np.allclose(np.asarray(out), np.asarray(out_ref),
                       rtol=1e-5, atol=1e-5)

    print("KERNEL_OK")
</pallas_src>

<mosaic_0001>
module attributes {stable_mosaic.version = 11 : i64} {
  func.func @linear_kernel(%arg0: memref<8x512xf32, #tpu.memory_space<vmem>>, %arg1: memref<8x8xf32, #tpu.memory_space<vmem>>, %arg2: memref<8x1xf32, #tpu.memory_space<vmem>>, %arg3: memref<8x512xf32, #tpu.memory_space<vmem>>) attributes {dimension_semantics = [], scalar_prefetch = 0 : i64, scratch_operands = 0 : i64, tpu.core_type = #tpu.core_type<tc>} {
    %c0 = arith.constant 0 : index
    %c0_0 = arith.constant 0 : index
    %0 = vector.load %arg1[%c0, %c0_0] : memref<8x8xf32, #tpu.memory_space<vmem>>, vector<8x8xf32>
    %c0_1 = arith.constant 0 : index
    %c0_2 = arith.constant 0 : index
    %1 = vector.load %arg0[%c0_1, %c0_2] : memref<8x512xf32, #tpu.memory_space<vmem>>, vector<8x512xf32>
    %cst = arith.constant dense<0.000000e+00> : vector<8x512xf32>
    %2 = tpu.matmul %0, %1, %cst {dimension_numbers = #tpu.dot_dimension_numbers<[1], [0], [0], [1], [0, 0, 1, 1], [], []>} : vector<8x8xf32>, vector<8x512xf32>, vector<8x512xf32> -> vector<8x512xf32>
    %c0_3 = arith.constant 0 : index
    %c0_4 = arith.constant 0 : index
    %3 = vector.load %arg2[%c0_3, %c0_4] : memref<8x1xf32, #tpu.memory_space<vmem>>, vector<8x1xf32>
    %4 = vector.broadcast %3 : vector<8x1xf32> to vector<8x512xf32>
    %5 = arith.addf %2, %4 : vector<8x512xf32>
    %c0_5 = arith.constant 0 : index
    %c0_6 = arith.constant 0 : index
    %6 = vector.load %arg3[%c0_5, %c0_6] : memref<8x512xf32, #tpu.memory_space<vmem>>, vector<8x512xf32>
    tpu.vector_store %arg3[%c0_5, %c0_6], %5 {strides = array<i32>} : memref<8x512xf32, #tpu.memory_space<vmem>>, vector<8x512xf32>,
    return
  }
}

</mosaic_0001>

<llo_original>
// kernel: linear_forward.1
$region0: #{linear_forward.1}
  #allocation0 [shape = 'u32[]', space=smem, size = 0x4, offset = 0x4, fixed_abs, tag = 'smem constant byte address 0x4 - core index']
  #allocation1 [shape = 'u32[144,128]{1,0:T(1,128)}', space=vmem, size = 0x12000, scoped, tag = 'internal scratch']
  %s0 = inlined_call_operand.vmem [shape: f32[8,512], index: 0, kind: input, shape index: {}]
  %s1 = inlined_call_operand.vmem [shape: f32[8,8], index: 1, kind: input, shape index: {}]
  %s2 = inlined_call_operand.vmem [shape: f32[8,1], index: 2, kind: input, shape index: {}]
  %s3 = inlined_call_operand.vmem [shape: f32[8,512], index: 3, kind: output, shape index: {}]
  %s4 = sld [smem:[#allocation0]]
  $region22: #{linear_forward.1} parent=0
    _
  %s6 = ssub.s32 1, %s4
  %s7 = scalar_select 0, %s6, %s4
  // Predicated region
  $region2: #{linear_forward.1} parent=0 // pred_check
    _
  $region3: #{linear_forward.1} parent=0 // pred_check_branch
    %9 = sbr.rel (0) target = $region5
  $region4: #{linear_forward.1} parent=0 // pred_region
    _
  $region5: #{linear_forward.1} parent=0 // pred_fallthru
    _
  // Predicated region
  $region6: #{linear_forward.1} parent=0 // pred_check
    _
  $region7: #{linear_forward.1} parent=0 // pred_check_branch
    %11 = sbr.rel (0) target = $region9
  $region8: #{linear_forward.1} parent=0 // pred_region
    _
  $region9: #{linear_forward.1} parent=0 // pred_fallthru
    _
  // Predicated region
  $region10: #{linear_forward.1} parent=0 // pred_check
    _
  $region11: #{linear_forward.1} parent=0 // pred_check_branch
    %13 = sbr.rel (0) target = $region13
  $region12: #{linear_forward.1} parent=0 // pred_region
    _
  $region13: #{linear_forward.1} parent=0 // pred_fallthru
    _
  %v14 = vld [vmem:[%s1] sm:$0xff]
  %v15 = vld [vmem:[%s0] sm:$0xff]
  %v16 = vld [vmem:[%s0 + $0x8] sm:$0xff]
  %v17 = vld [vmem:[%s0 + $0x10] sm:$0xff]
  %v18 = vld [vmem:[%s0 + $0x18] sm:$0xff]
  %v19 = vld [vmem:[%s2] sm:$0xff]
  %21 = vset.pattern.permute.xlu0 0
  %22 = vperm.xlu0 %21, %v19
  %v23 = vpop.permute.xlu0 %22
  %vm25 = vcmask 64512
  %v27 = vsel %vm25, %v14, 0
  %29 = vmatprep.subr.mxu0 %v16
  %30 = vmatpush1.msra.mxu0 %v15
  %31 = vmatprep.subr.mxu0 0.0
  %32 = vmatpush1.msra.mxu0 0.0
  %33 = vmatprep.subr.mxu0 0.0
  %34 = vmatpush1.msra.mxu0 0.0
  %35 = vmatprep.subr.mxu0 0.0
  %36 = vmatpush1.msra.mxu0 0.0
  %37 = vmatprep.subr.mxu0 0.0
  %38 = vmatpush1.msra.mxu0 0.0
  %39 = vmatprep.subr.mxu0 0.0
  %40 = vmatpush1.msra.mxu0 0.0
  %41 = vmatprep.subr.mxu0 0.0
  %42 = vmatpush1.msra.mxu0 0.0
  %43 = vmatprep.subr.mxu0 0.0
  %44 = vmatpush1.msra.mxu0 0.0
  %45 = vmatprep.subr.mxu0 0.0
  %46 = vmatpush1.msra.mxu0 0.0
  %47 = vmatprep.subr.mxu0 0.0
  %48 = vmatpush1.msra.mxu0 0.0
  %49 = vmatprep.subr.mxu0 0.0
  %50 = vmatpush1.msra.mxu0 0.0
  %51 = vmatprep.subr.mxu0 0.0
  %52 = vmatpush1.msra.mxu0 0.0
  %53 = vmatprep.subr.mxu0 0.0
  %54 = vmatpush1.msra.mxu0 0.0
  %55 = vmatprep.subr.mxu0 0.0
  %56 = vmatpush1.msra.mxu0 0.0
  %57 = vmatprep.subr.mxu0 0.0
  %58 = vmatpush1.msra.mxu0 0.0
  %59 = vmatprep.subr.mxu0 0.0
  %60 = vmatpush1.msra.mxu0 0.0
  %61 = vmatprep.subr.mxu0 0.0
  %62 = vmatpush1.msra.mxu0 0.0
  %63 = vmatprep.subr.mxu0 0.0
  %64 = vmatpush1.msra.mxu0 0.0
  %65 = vmatprep.subr.mxu0 0.0
  %66 = vmatpush1.msra.mxu0 0.0
  %67 = vmatprep.subr.mxu0 0.0
  %68 = vmatpush1.msra.mxu0 0.0
  %69 = vmatprep.subr.mxu0 0.0
  %70 = vmatpush1.msra.mxu0 0.0
  %71 = vmatprep.subr.mxu0 0.0
  %72 = vmatpush1.msra.mxu0 0.0
  %73 = vmatprep.subr.mxu0 0.0
  %74 = vmatpush1.msra.mxu0 0.0
  %75 = vmatprep.subr.mxu0 0.0
  %76 = vmatpush1.msra.mxu0 0.0
  %77 = vmatprep.subr.mxu0 0.0
  %78 = vmatpush1.msra.mxu0 0.0
  %79 = vmatprep.subr.mxu0 0.0
  %80 = vmatpush1.msra.mxu0 0.0
  %81 = vmatprep.subr.mxu0 0.0
  %82 = vmatpush1.msra.mxu0 0.0
  %83 = vmatprep.subr.mxu0 0.0
  %84 = vmatpush1.msra.mxu0 0.0
  %85 = vmatprep.subr.mxu0 0.0
  %86 = vmatpush1.msra.mxu0 0.0
  %87 = vmatprep.subr.mxu0 0.0
  %88 = vmatpush1.msra.mxu0 0.0
  %89 = vmatprep.subr.mxu0 0.0
  %90 = vmatpush1.msra.mxu0 0.0
  %91 = vmatprep.subr.mxu0 0.0
  %92 = vmatpush1.msra.mxu0 0.0
  %93 = vmatprep.mubr.f32.mxu0 0.0
  %94 = vmatmul.mubr.f32.gmra.mrb[0].mxu0 %v27
  %v95 = vpop.f32.mrb[0].mxu0
  %v96 = vadd.f32 %v23, %v95
  %v97 = vpop.f32.mrb[0].mxu0
  %v98 = vadd.f32 %v23, %v97
  %99 = vdwg.mxu0
  %100 = vmatprep.subr.mxu0 %v18
  %101 = vmatpush1.msra.mxu0 %v17
  %102 = vmatprep.subr.mxu0 0.0
  %103 = vmatpush1.msra.mxu0 0.0
  %104 = vmatprep.subr.mxu0 0.0
  %105 = vmatpush1.msra.mxu0 0.0
  %106 = vmatprep.subr.mxu0 0.0
  %107 = vmatpush1.msra.mxu0 0.0
  %108 = vmatprep.subr.mxu0 0.0
  %109 = vmatpush1.msra.mxu0 0.0
  %110 = vmatprep.subr.mxu0 0.0
  %111 = vmatpush1.msra.mxu0 0.0
  %112 = vmatprep.subr.mxu0 0.0
  %113 = vmatpush1.msra.mxu0 0.0
  %114 = vmatprep.subr.mxu0 0.0
  %115 = vmatpush1.msra.mxu0 0.0
  %116 = vmatprep.subr.mxu0 0.0
  %117 = vmatpush1.msra.mxu0 0.0
  %118 = vmatprep.subr.mxu0 0.0
  %119 = vmatpush1.msra.mxu0 0.0
  %120 = vmatprep.subr.mxu0 0.0
  %121 = vmatpush1.msra.mxu0 0.0
  %122 = vmatprep.subr.mxu0 0.0
  %123 = vmatpush1.msra.mxu0 0.0
  %124 = vmatprep.subr.mxu0 0.0
  %125 = vmatpush1.msra.mxu0 0.0
  %126 = vmatprep.subr.mxu0 0.0
  %127 = vmatpush1.msra.mxu0 0.0
  %128 = vmatprep.subr.mxu0 0.0
  %129 = vmatpush1.msra.mxu0 0.0
  %130 = vmatprep.subr.mxu0 0.0
  %131 = vmatpush1.msra.mxu0 0.0
  %132 = vmatprep.subr.mxu0 0.0
  %133 = vmatpush1.msra.mxu0 0.0
  %134 = vmatprep.subr.mxu0 0.0
  %135 = vmatpush1.msra.mxu0 0.0
  %136 = vmatprep.subr.mxu0 0.0
  %137 = vmatpush1.msra.mxu0 0.0
  %138 = vmatprep.subr.mxu0 0.0
  %139 = vmatpush1.msra.mxu0 0.0
  %140 = vmatprep.subr.mxu0 0.0
  %141 = vmatpush1.msra.mxu0 0.0
  %142 = vmatprep.subr.mxu0 0.0
  %143 = vmatpush1.msra.mxu0 0.0
  %144 = vmatprep.subr.mxu0 0.0
  %145 = vmatpush1.msra.mxu0 0.0
  %146 = vmatprep.subr.mxu0 0.0
  %147 = vmatpush1.msra.mxu0 0.0
  %148 = vmatprep.subr.mxu0 0.0
  %149 = vmatpush1.msra.mxu0 0.0
  %150 = vmatprep.subr.mxu0 0.0
  %151 = vmatpush1.msra.mxu0 0.0
  %152 = vmatprep.subr.mxu0 0.0
  %153 = vmatpush1.msra.mxu0 0.0
  %154 = vmatprep.subr.mxu0 0.0
  %155 = vmatpush1.msra.mxu0 0.0
  %156 = vmatprep.subr.mxu0 0.0
  %157 = vmatpush1.msra.mxu0 0.0
  %158 = vmatprep.subr.mxu0 0.0
  %159 = vmatpush1.msra.mxu0 0.0
  %160 = vmatprep.subr.mxu0 0.0
  %161 = vmatpush1.msra.mxu0 0.0
  %162 = vmatprep.subr.mxu0 0.0
  %163 = vmatpush1.msra.mxu0 0.0
  %164 = vmatprep.mubr.f32.mxu0 0.0
  %165 = vmatmul.mubr.f32.gmra.mrb[0].mxu0 %v27
  %v166 = vpop.f32.mrb[0].mxu0
  %v167 = vadd.f32 %v23, %v166
  %v168 = vpop.f32.mrb[0].mxu0
  %v169 = vadd.f32 %v23, %v168
  %170 = vdwg.mxu0
  %171 = vst [vmem:[%s3] sm:$0xff] %v96
  %172 = vst [vmem:[%s3 + $0x8] sm:$0xff] %v98
  %173 = vst [vmem:[%s3 + $0x10] sm:$0xff] %v167
  %174 = vst [vmem:[%s3 + $0x18] sm:$0xff] %v169
  // Predicated region
  $region14: #{linear_forward.1} parent=0 // pred_check
    _
  $region15: #{linear_forward.1} parent=0 // pred_check_branch
    %176 = sbr.rel (0) target = $region17
  $region16: #{linear_forward.1} parent=0 // pred_region
    _
  $region17: #{linear_forward.1} parent=0 // pred_fallthru
    _
  // Predicated region
  $region18: #{linear_forward.1} parent=0 // pred_check
    _
  $region19: #{linear_forward.1} parent=0 // pred_check_branch
    %178 = sbr.rel (0) target = $region21
  $region20: #{linear_forward.1} parent=0 // pred_region
    _
  $region21: #{linear_forward.1} parent=0 // pred_fallthru
    _

</llo_original>
